<compile_context>
chip_gen: v7x
topology: tpu7x:2x2x1
jax: 0.10.0
libtpu: 0.0.40
codegen_flags: <defaults>
</compile_context>

<pallas_src>
import jax
import jax.numpy as jnp
from jax.experimental import pallas as pl
from jax.experimental.pallas import tpu as pltpu

# ----------------------------- config ---------------------------------------
TXT_DIM   = 128      # stands for ctx_dim = 512
IMG_DIM   = 256      # stands for vision width = 768
QK_DIM    = IMG_DIM // 4
SEQ_LEN   = 16       # stands for 77 (prefix 1 + ctx 4 + suffix 11)
N_CLS     = 8        # stands for 64
N_CTX_TXT = 4        # ctx_text rows (n_ctx + 2)
N_CTX     = 2        # compound prompt rows
VOCAB     = 512
N_JP      = 75
N_BL      = 44
RS_OUT    = 120
RS_OUT_PAD = 128     # lane-dense padded output width for the RS kernel
IMG_C, IMG_H, IMG_W = 3, 32, 32
DEPTH_M1  = 3        # compound_prompts_depth - 1

S_REAL = 2 * N_CTX   # 4 real rows in the joint MSA input
S_PAD  = 8           # padded to native sublane height (masked in softmax)


# --------------------------- Pallas kernels ---------------------------------
def _fused_mha_kernel(x_ref, g_ref, b_ref, wq_ref, wk_ref, wv_ref, o_ref):
    """One grid step = one MSA depth: LN(fp32) -> Q,K,V -> softmax(QK^T) @ V.

    The 1/sqrt(out_dim) score scale is pre-folded into wq by the wrapper
    (matches the PyTorch reference which divides by out_dim**0.5, NOT sqrt(d_k)).
    Padded rows 4..7 are excluded from softmax via a key-column mask.
    """
    x = x_ref[0].astype(jnp.float32)                         # (S_PAD, D)
    mu = jnp.mean(x, axis=-1, keepdims=True)
    var = jnp.mean(jnp.square(x - mu), axis=-1, keepdims=True)
    xn = (x - mu) * jax.lax.rsqrt(var + 1e-5)
    xn = xn * g_ref[0] + b_ref[0]                            # LayerNorm affine
    q = jnp.dot(xn, wq_ref[0], preferred_element_type=jnp.float32)   # (S_PAD, D/4)
    k = jnp.dot(xn, wk_ref[0], preferred_element_type=jnp.float32)   # (S_PAD, D/4)
    s = jax.lax.dot_general(q, k, (((1,), (1,)), ((), ())),
                            preferred_element_type=jnp.float32)      # (S_PAD, S_PAD)
    # mask padded key columns so real-row outputs are unchanged by the padding
    col = jax.lax.broadcasted_iota(jnp.int32, (S_PAD, S_PAD), 1)
    s = jnp.where(col < S_REAL, s, -1e30)
    s = s - jnp.max(s, axis=-1, keepdims=True)
    p = jnp.exp(s)
    p = p * pl.reciprocal(jnp.sum(p, axis=-1, keepdims=True), approx=True)
    v = jnp.dot(xn, wv_ref[0], preferred_element_type=jnp.float32)   # (S_PAD, D)
    o_ref[0] = jnp.dot(p, v, preferred_element_type=jnp.float32)


def mha_fused_forward(joint_stack, msa_params):
    """joint_stack: (DEPTH_M1, S_REAL, D) -> (DEPTH_M1, S_PAD, D); one pallas_call."""
    x = jnp.pad(joint_stack, ((0, 0), (0, S_PAD - S_REAL), (0, 0)))
    g = jnp.stack([p['ln_g'] for p in msa_params])                  # (depth, 1, D)
    b = jnp.stack([p['ln_b'] for p in msa_params])
    scale = 1.0 / (IMG_DIM ** 0.5)                                  # out_dim**-0.5 (per spec)
    wq = jnp.stack([p['wq'] for p in msa_params]) * scale           # fold score scale
    wk = jnp.stack([p['wk'] for p in msa_params])
    wv = jnp.stack([p['wv'] for p in msa_params])
    return pl.pallas_call(
        _fused_mha_kernel,
        out_shape=jax.ShapeDtypeStruct((DEPTH_M1, S_PAD, IMG_DIM), jnp.float32),
        grid=(DEPTH_M1,),
        in_specs=[
            pl.BlockSpec((1, S_PAD, IMG_DIM), lambda d: (d, 0, 0)),
            pl.BlockSpec((1, 1, IMG_DIM), lambda d: (d, 0, 0)),
            pl.BlockSpec((1, 1, IMG_DIM), lambda d: (d, 0, 0)),
            pl.BlockSpec((1, IMG_DIM, QK_DIM), lambda d: (d, 0, 0)),
            pl.BlockSpec((1, IMG_DIM, QK_DIM), lambda d: (d, 0, 0)),
            pl.BlockSpec((1, IMG_DIM, IMG_DIM), lambda d: (d, 0, 0)),
        ],
        out_specs=pl.BlockSpec((1, S_PAD, IMG_DIM), lambda d: (d, 0, 0)),
        compiler_params=pltpu.CompilerParams(
            dimension_semantics=("parallel",)),   # v7x: shard depths across 2 TCs
    )(x, g, b, wq, wk, wv)


def _linear_bias_kernel(x_ref, w_ref, b_ref, o_ref):
    o_ref[...] = (jnp.dot(x_ref[...], w_ref[...],
                          preferred_element_type=jnp.float32) + b_ref[...])


def linear_bias(x, w, b):
    """proj_JB: (N, K) @ (K, M) + (1, M). Whole problem resident in VMEM, no grid."""
    N, _ = x.shape
    M = w.shape[1]
    return pl.pallas_call(
        _linear_bias_kernel,
        out_shape=jax.ShapeDtypeStruct((N, M), jnp.float32),
    )(x, w, b)


def _rs_head_kernel(x_ref, w_ref, b_ref, o_ref):
    """Synthetic RS head tail: linear + sigmoid on the pooled features (lane-dense 128 out)."""
    logits = (jnp.dot(x_ref[...], w_ref[...],
                      preferred_element_type=jnp.float32) + b_ref[...])
    o_ref[...] = jax.nn.sigmoid(logits)


def rs_forward(imgs_nchw, w, b):
    B = imgs_nchw.shape[0]
    # GAP done in plain XLA per perf review (XLU cross-lane reduce was pure overhead
    # inside a dedicated kernel at this size).
    gap = jnp.mean(imgs_nchw.reshape(B, IMG_C, IMG_H * IMG_W), axis=-1)   # (B, C)
    w_pad = jnp.pad(w, ((0, 0), (0, RS_OUT_PAD - RS_OUT)))
    b_pad = jnp.pad(b, ((0, 0), (0, RS_OUT_PAD - RS_OUT)))
    out = pl.pallas_call(
        _rs_head_kernel,
        out_shape=jax.ShapeDtypeStruct((B, RS_OUT_PAD), jnp.float32),
    )(gap, w_pad, b_pad)
    return out[:, :RS_OUT]                                   # att_I = sigmoid(RS(img))


# ------------------------------ glue ----------------------------------------
def surrogate_tokenize(mask, seq_len, offset):
    """Deterministic stand-in for clip.tokenize on selected word lists.

    Selected word at position p gets token id (p + offset); selected ids are
    compacted to the front, BOS=1 prepended, padded with 0 to seq_len.
    """
    # TODO(synk): real clip.tokenize (host-side BPE on strings) has no Pallas/JAX
    # equivalent; this is a deterministic surrogate preserving data dependence.
    B, L = mask.shape
    pos = jnp.arange(L, dtype=jnp.int32)
    ids = jnp.where(mask, pos + offset, 0)
    order = jnp.argsort((~mask).astype(jnp.int32), axis=1)          # stable
    compact = jnp.take_along_axis(ids, order, axis=1)
    toks = jnp.zeros((B, seq_len), jnp.int32)
    toks = toks.at[:, 0].set(1)                                     # BOS
    n = min(L, seq_len - 1)
    toks = toks.at[:, 1:1 + n].set(compact[:, :n].astype(jnp.int32))
    return toks


def init_params(key):
    ks = iter(jax.random.split(key, 32))
    nrm = lambda shape, std=0.02: jax.random.normal(next(ks), shape, jnp.float32) * std
    p = {}
    p['token_embedding'] = nrm((VOCAB, TXT_DIM))
    p['ctx_text'] = nrm((N_CTX_TXT, TXT_DIM))                 # nn.Parameter(4, 512)
    p['ctx_img'] = nrm((N_CTX_TXT, IMG_DIM))                  # nn.Parameter(4, 768)
    p['proj_w'] = nrm((TXT_DIM, IMG_DIM))                     # proj_JB stored (in, out)
    p['proj_b'] = jnp.zeros((1, IMG_DIM), jnp.float32)
    # TODO(synk): RS.pth ResNet checkpoint cannot be loaded; synthetic GAP+linear head.
    p['rs_w'] = nrm((IMG_C, RS_OUT), 0.5)
    p['rs_b'] = jnp.zeros((1, RS_OUT), jnp.float32)
    p['compound_text'] = [nrm((N_CTX, IMG_DIM)) for _ in range(DEPTH_M1)]
    p['compound_img']  = [nrm((N_CTX, IMG_DIM)) for _ in range(DEPTH_M1)]
    p['JP_prompts']    = [nrm((1, IMG_DIM)) for _ in range(DEPTH_M1)]
    p['BL_prompts']    = [nrm((1, IMG_DIM)) for _ in range(DEPTH_M1)]
    p['msa'] = [dict(ln_g=jnp.ones((1, IMG_DIM), jnp.float32),
                     ln_b=jnp.zeros((1, IMG_DIM), jnp.float32),
                     wq=nrm((IMG_DIM, QK_DIM)),
                     wk=nrm((IMG_DIM, QK_DIM)),
                     wv=nrm((IMG_DIM, IMG_DIM)))
                for _ in range(DEPTH_M1)]
    return p


def prompt_learner_forward(params, batch):
    emb = params['token_embedding']                            # (VOCAB, TXT_DIM)

    # ctx_text: (4, 512) -> expand over classes
    ctx_text = jnp.broadcast_to(params['ctx_text'][None], (N_CLS, N_CTX_TXT, TXT_DIM))
    ctx_img = params['ctx_img']

    texts = emb[batch['tokens']]                               # (N_CLS, SEQ, TXT_DIM)
    prefix = texts[:, :1, :]                                   # texts[:, :1, :]
    suffix = texts[:, 1 + N_CTX_TXT:SEQ_LEN, :]                # texts[:, 5:77, :]
    texts = jnp.concatenate([prefix, ctx_text, suffix], axis=1)

    texts_JP = emb[batch['tokens_JP']]
    texts_BL = emb[batch['tokens_BL']]

    att_T = jnp.concatenate([batch['labels_JP'], batch['labels_BL']], axis=1)

    # att_I = sigmoid(RS(img))   -- Pallas kernel (lane-dense 128 out, sliced to 120)
    att_I = rs_forward(batch['imgs'], params['rs_w'], params['rs_b'])
    lb_JP = att_I[:, 0:N_JP]
    lb_BL = att_I[:, N_JP + 1:RS_OUT]                          # skips the 'gap' logit (idx 75)

    token_JP = surrogate_tokenize(lb_JP > 0.5, SEQ_LEN, offset=2)
    token_BL = surrogate_tokenize(lb_BL > 0.5, SEQ_LEN, offset=2 + N_JP)
    embed_JP = emb[token_JP]                                   # (B, SEQ, TXT_DIM)
    embed_BL = emb[token_BL]

    # proj_JB linear -- single fused Pallas kernel for JP and BL rows
    B_img = embed_JP.shape[0]
    x_all = jnp.concatenate([embed_JP.reshape(B_img * SEQ_LEN, TXT_DIM),
                             embed_BL.reshape(B_img * SEQ_LEN, TXT_DIM)], axis=0)
    out_all = linear_bias(x_all, params['proj_w'], params['proj_b'])
    imgs_JP = out_all[:B_img * SEQ_LEN].reshape(B_img, SEQ_LEN, IMG_DIM)
    imgs_BL = out_all[B_img * SEQ_LEN:].reshape(B_img, SEQ_LEN, IMG_DIM)

    # three MSA blocks -- ONE fused Pallas attention kernel, grid over depth
    joint_stack = jnp.stack(
        [jnp.concatenate([params['compound_text'][d], params['compound_img'][d]], axis=0)
         for d in range(DEPTH_M1)], axis=0)                    # (DEPTH_M1, 4, D)
    joint_out_all = mha_fused_forward(joint_stack, params['msa'])   # (DEPTH_M1, 8, D)

    textual_prompts, visual_prompts = [], []
    for d in range(DEPTH_M1):
        textual_prompts.append(joint_out_all[d, 0:N_CTX, 0:TXT_DIM])   # truncate to 512 (per spec)
        visual_prompts.append(joint_out_all[d, N_CTX:2 * N_CTX, :])

    return (texts, texts_JP, texts_BL, imgs_JP, imgs_BL,
            att_T.astype(jnp.float32), att_I.astype(jnp.float32),
            ctx_img, params['JP_prompts'], params['BL_prompts'],
            textual_prompts, visual_prompts)


# ------------------------------ main -----------------------------------------
if __name__ == "__main__":
    key = jax.random.PRNGKey(0)
    k1, k2, k3, k4, k5, k6 = jax.random.split(key, 6)
    B_IMG = 2
    batch = {
        'tokens':    jax.random.randint(k1, (N_CLS, SEQ_LEN), 0, VOCAB, dtype=jnp.int32),
        'tokens_JP': jax.random.randint(k2, (B_IMG, SEQ_LEN), 0, VOCAB, dtype=jnp.int32),
        'tokens_BL': jax.random.randint(k3, (B_IMG, SEQ_LEN), 0, VOCAB, dtype=jnp.int32),
        'labels_JP': (jax.random.uniform(k4, (B_IMG, N_JP)) > 0.5).astype(jnp.float32),
        'labels_BL': (jax.random.uniform(k5, (B_IMG, N_BL)) > 0.5).astype(jnp.float32),
        'imgs':      jax.random.normal(k6, (B_IMG, IMG_C, IMG_H, IMG_W), jnp.float32),
    }
    params = init_params(jax.random.PRNGKey(42))

    out = prompt_learner_forward(params, batch)
    jax.tree_util.tree_map(jax.block_until_ready, out)

    # light sanity checks on shapes
    assert out[0].shape == (N_CLS, SEQ_LEN, TXT_DIM)          # texts
    assert out[3].shape == (B_IMG, SEQ_LEN, IMG_DIM)          # imgs_JP
    assert out[6].shape == (B_IMG, RS_OUT)                    # att_I
    assert out[10][0].shape == (N_CTX, TXT_DIM)               # textual_prompts[0]
    assert out[11][0].shape == (N_CTX, IMG_DIM)               # visual_prompts[0]
    print("KERNEL_OK")
</pallas_src>

<mosaic_0001>
module attributes {stable_mosaic.version = 11 : i64} {
  func.func @_rs_head_kernel(%arg0: memref<2x3xf32, #tpu.memory_space<vmem>>, %arg1: memref<3x128xf32, #tpu.memory_space<vmem>>, %arg2: memref<1x128xf32, #tpu.memory_space<vmem>>, %arg3: memref<2x128xf32, #tpu.memory_space<vmem>>) attributes {dimension_semantics = [], scalar_prefetch = 0 : i64, scratch_operands = 0 : i64, tpu.core_type = #tpu.core_type<tc>} {
    %c0 = arith.constant 0 : index
    %c0_0 = arith.constant 0 : index
    %0 = vector.load %arg0[%c0, %c0_0] : memref<2x3xf32, #tpu.memory_space<vmem>>, vector<2x3xf32>
    %c0_1 = arith.constant 0 : index
    %c0_2 = arith.constant 0 : index
    %1 = vector.load %arg1[%c0_1, %c0_2] : memref<3x128xf32, #tpu.memory_space<vmem>>, vector<3x128xf32>
    %cst = arith.constant dense<0.000000e+00> : vector<2x128xf32>
    %2 = tpu.matmul %0, %1, %cst {dimension_numbers = #tpu.dot_dimension_numbers<[1], [0], [0], [1], [0, 0, 1, 1], [], []>} : vector<2x3xf32>, vector<3x128xf32>, vector<2x128xf32> -> vector<2x128xf32>
    %c0_3 = arith.constant 0 : index
    %c0_4 = arith.constant 0 : index
    %3 = vector.load %arg2[%c0_3, %c0_4] : memref<1x128xf32, #tpu.memory_space<vmem>>, vector<1x128xf32>
    %4 = vector.broadcast %3 : vector<1x128xf32> to vector<2x128xf32>
    %5 = arith.addf %2, %4 : vector<2x128xf32>
    %6 = arith.negf %5 : vector<2x128xf32>
    %7 = math.exp %6 : vector<2x128xf32>
    %cst_5 = arith.constant 1.000000e+00 : f32
    %8 = vector.broadcast %cst_5 : f32 to vector<2x128xf32>
    %9 = arith.addf %8, %7 : vector<2x128xf32>
    %10 = arith.divf %8, %9 : vector<2x128xf32>
    %c0_6 = arith.constant 0 : index
    %c0_7 = arith.constant 0 : index
    %11 = vector.load %arg3[%c0_6, %c0_7] : memref<2x128xf32, #tpu.memory_space<vmem>>, vector<2x128xf32>
    tpu.vector_store %arg3[%c0_6, %c0_7], %10 {strides = array<i32>} : memref<2x128xf32, #tpu.memory_space<vmem>>, vector<2x128xf32>,
    return
  }
}

</mosaic_0001>

<llo_original>
// kernel: tpu_custom_call.1
$region0: #{tpu_custom_call.1}
  #allocation0 [shape = 'u32[]', space=smem, size = 0x4, offset = 0x4, fixed_abs, tag = 'smem constant byte address 0x4 - core index']
  #allocation1 [shape = 'u32[144,128]{1,0:T(1,128)}', space=vmem, size = 0x12000, scoped, tag = 'internal scratch']
  %s0 = inlined_call_operand.hbm [shape: f32[2,3], index: 0, kind: input, shape index: {}]
  %s1 = inlined_call_operand.hbm [shape: f32[3,128], index: 1, kind: input, shape index: {}]
  %s2 = inlined_call_operand.vmem [shape: f32[1,128], index: 2, kind: input, shape index: {}]
  %s3 = inlined_call_operand.hbm [shape: f32[2,128], index: 3, kind: output, shape index: {}]
  %s4 = sld [smem:[#allocation0]]
  $region30: #{tpu_custom_call.1} parent=0
    _
  %s6 = ssub.s32 1, %s4
  %s7 = scalar_select 0, %s6, %s4
  $region1: #{tpu_custom_call.1} parent=0
    #allocation2 [shape = 'u8[1024]{0}', space=vmem, size = 0x400, scoped, tag = 'input window, operand 0, single buffered']
    #allocation3 [shape = 's32[1]{0}', space=sflag, size = 0x4, scoped, tag = 'scoped memory for tpu_custom_call.1']
    #allocation4 [shape = 's32[1]{0}', space=sflag, size = 0x4, scoped, tag = 'scoped memory for tpu_custom_call.1']
    #allocation5 [shape = 'u8[2048]{0}', space=vmem, size = 0x800, scoped, tag = 'input window, operand 1, single buffered']
    #allocation6 [shape = 's32[1]{0}', space=sflag, size = 0x4, scoped, tag = 'scoped memory for tpu_custom_call.1']
    #allocation7 [shape = 'u8[1024]{0}', space=vmem, size = 0x400, scoped, tag = 'output window, operand 0, single buffered']
    %8 = vsyncpa [#allocation3], 0
    %9 = vsyncpa [#allocation6], 0
    %10 = vsyncpa [#allocation4], 0
    // Predicated region
    $region2: #{tpu_custom_call.1} parent=1 // pred_check
      _
    $region3: #{tpu_custom_call.1} parent=1 // pred_check_branch
      %12 = sbr.rel (0) target = $region5
    $region4: #{tpu_custom_call.1} parent=1 // pred_region
      %s14 = ssub.s32 32, 32
      %15 = vsyncadd [#allocation3], %s14
      %s17 = sshll.u32 [#allocation2], 4
      %s18 = int_to_ptr.vmem [resolvable:$true] %s17
      %20 = dma.hbm_to_vmem [thread:$0]  %s0, 32, %s18, [#allocation3]
    $region5: #{tpu_custom_call.1} parent=1 // pred_fallthru
      _
    // Predicated region
    $region6: #{tpu_custom_call.1} parent=1 // pred_check
      _
    $region7: #{tpu_custom_call.1} parent=1 // pred_check_branch
      %22 = sbr.rel (0) target = $region9
    $region8: #{tpu_custom_call.1} parent=1 // pred_region
      %s24 = ssub.s32 64, 64
      %25 = vsyncadd [#allocation6], %s24
      %s27 = sshll.u32 [#allocation5], 4
      %s28 = int_to_ptr.vmem [resolvable:$true] %s27
      %30 = dma.hbm_to_vmem [thread:$0]  %s1, 64, %s28, [#allocation6]
    $region9: #{tpu_custom_call.1} parent=1 // pred_fallthru
      _
    // Predicated region
    $region10: #{tpu_custom_call.1} parent=1 // pred_check
      _
    $region11: #{tpu_custom_call.1} parent=1 // pred_check_branch
      %32 = sbr.rel (0) target = $region13
    $region12: #{tpu_custom_call.1} parent=1 // pred_region
      _
    $region13: #{tpu_custom_call.1} parent=1 // pred_fallthru
      _
    // Predicated region
    $region14: #{tpu_custom_call.1} parent=1 // pred_check
      _
    $region15: #{tpu_custom_call.1} parent=1 // pred_check_branch
      %34 = sbr.rel (0) target = $region17
    $region16: #{tpu_custom_call.1} parent=1 // pred_region
      %35 = dma.done [#allocation3], 32
    $region17: #{tpu_custom_call.1} parent=1 // pred_fallthru
      _
    // Predicated region
    $region18: #{tpu_custom_call.1} parent=1 // pred_check
      _
    $region19: #{tpu_custom_call.1} parent=1 // pred_check_branch
      %37 = sbr.rel (0) target = $region21
    $region20: #{tpu_custom_call.1} parent=1 // pred_region
      %38 = dma.done [#allocation6], 64
    $region21: #{tpu_custom_call.1} parent=1 // pred_fallthru
      _
    %v39 = vld [vmem:[#allocation2] sm:$0x3]
    %v40 = vld [vmem:[#allocation5] sm:$0x7]
    %v41 = vld [vmem:[%s2] sm:$0x1]
    %v43 = vlaneseq
    %v44 = vshrl.u32 %v43, 7
    %v45 = vsub.s32 0, %v44
    %v46 = vrot.slane %v41, %v45
    %vm48 = vcmask 23552
    %v50 = vsel %vm48, %v39, 0
    %vm52 = vcmask 1042432
    %v54 = vsel %vm52, %v40, 0
    %56 = vmatprep.subr.mxu0 0.0
    %57 = vmatpush1.msra.mxu0 %v54
    %58 = vmatprep.subr.mxu0 0.0
    %59 = vmatpush1.msra.mxu0 0.0
    %60 = vmatprep.subr.mxu0 0.0
    %61 = vmatpush1.msra.mxu0 0.0
    %62 = vmatprep.subr.mxu0 0.0
    %63 = vmatpush1.msra.mxu0 0.0
    %64 = vmatprep.subr.mxu0 0.0
    %65 = vmatpush1.msra.mxu0 0.0
    %66 = vmatprep.subr.mxu0 0.0
    %67 = vmatpush1.msra.mxu0 0.0
    %68 = vmatprep.subr.mxu0 0.0
    %69 = vmatpush1.msra.mxu0 0.0
    %70 = vmatprep.subr.mxu0 0.0
    %71 = vmatpush1.msra.mxu0 0.0
    %72 = vmatprep.subr.mxu0 0.0
    %73 = vmatpush1.msra.mxu0 0.0
    %74 = vmatprep.subr.mxu0 0.0
    %75 = vmatpush1.msra.mxu0 0.0
    %76 = vmatprep.subr.mxu0 0.0
    %77 = vmatpush1.msra.mxu0 0.0
    %78 = vmatprep.subr.mxu0 0.0
    %79 = vmatpush1.msra.mxu0 0.0
    %80 = vmatprep.subr.mxu0 0.0
    %81 = vmatpush1.msra.mxu0 0.0
    %82 = vmatprep.subr.mxu0 0.0
    %83 = vmatpush1.msra.mxu0 0.0
    %84 = vmatprep.subr.mxu0 0.0
    %85 = vmatpush1.msra.mxu0 0.0
    %86 = vmatprep.subr.mxu0 0.0
    %87 = vmatpush1.msra.mxu0 0.0
    %88 = vmatprep.subr.mxu0 0.0
    %89 = vmatpush1.msra.mxu0 0.0
    %90 = vmatprep.subr.mxu0 0.0
    %91 = vmatpush1.msra.mxu0 0.0
    %92 = vmatprep.subr.mxu0 0.0
    %93 = vmatpush1.msra.mxu0 0.0
    %94 = vmatprep.subr.mxu0 0.0
    %95 = vmatpush1.msra.mxu0 0.0
    %96 = vmatprep.subr.mxu0 0.0
    %97 = vmatpush1.msra.mxu0 0.0
    %98 = vmatprep.subr.mxu0 0.0
    %99 = vmatpush1.msra.mxu0 0.0
    %100 = vmatprep.subr.mxu0 0.0
    %101 = vmatpush1.msra.mxu0 0.0
    %102 = vmatprep.subr.mxu0 0.0
    %103 = vmatpush1.msra.mxu0 0.0
    %104 = vmatprep.subr.mxu0 0.0
    %105 = vmatpush1.msra.mxu0 0.0
    %106 = vmatprep.subr.mxu0 0.0
    %107 = vmatpush1.msra.mxu0 0.0
    %108 = vmatprep.subr.mxu0 0.0
    %109 = vmatpush1.msra.mxu0 0.0
    %110 = vmatprep.subr.mxu0 0.0
    %111 = vmatpush1.msra.mxu0 0.0
    %112 = vmatprep.subr.mxu0 0.0
    %113 = vmatpush1.msra.mxu0 0.0
    %114 = vmatprep.subr.mxu0 0.0
    %115 = vmatpush1.msra.mxu0 0.0
    %116 = vmatprep.subr.mxu0 0.0
    %117 = vmatpush1.msra.mxu0 0.0
    %118 = vmatprep.subr.mxu0 0.0
    %119 = vmatpush1.msra.mxu0 0.0
    %120 = vmatprep.mubr.f32.mxu0 0.0
    %121 = vmatmul.mubr.f32.gmra.mrb[0].mxu0 %v50
    %v122 = vpop.f32.mrb[0].mxu0
    %v123 = vadd.f32 %v46, %v122
    %v124 = vpop.f32.mrb[0].mxu0
    %125 = vdwg.mxu0
    %v126 = vxor.u32 %v123, 2147483648
    %v127 = vmul.f32 %v126, 1.442695
    %v128 = vpow.pop %v127
    %v129 = vadd.f32 %v128, 1.0
    %v130 = vrcp.pop %v129
    %v131 = vmul.f32 1.0, %v130
    %132 = vst [vmem:[#allocation7] sm:$0x3] %v131
    // Predicated region
    $region22: #{tpu_custom_call.1} parent=1 // pred_check
      _
    $region23: #{tpu_custom_call.1} parent=1 // pred_check_branch
      %134 = sbr.rel (0) target = $region25
    $region24: #{tpu_custom_call.1} parent=1 // pred_region
      %s136 = ssub.s32 32, 32
      %137 = vsyncadd [#allocation4], %s136
      %s139 = sshll.u32 [#allocation7], 4
      %s140 = int_to_ptr.vmem [resolvable:$true] %s139
      %142 = dma.vmem_to_hbm [thread:$0]  %s140, 32, %s3, [#allocation4]
    $region25: #{tpu_custom_call.1} parent=1 // pred_fallthru
      _
    // Predicated region
    $region26: #{tpu_custom_call.1} parent=1 // pred_check
      _
    $region27: #{tpu_custom_call.1} parent=1 // pred_check_branch
      %144 = sbr.rel (0) target = $region29
    $region28: #{tpu_custom_call.1} parent=1 // pred_region
      %145 = dma.done [#allocation4], 32
    $region29: #{tpu_custom_call.1} parent=1 // pred_fallthru
      _
    %146 = vsyncpa [#allocation3], 1
    %147 = vsyncpa [#allocation6], 1
    %148 = vsyncpa [#allocation4], 1

</llo_original>
